<compile_context>
chip_gen: v7x
topology: tpu7x:2x2x1
jax: 0.10.0
libtpu: 0.0.40
codegen_flags: <defaults>
</compile_context>

<pallas_src>
import jax
import jax.numpy as jnp
from jax.experimental import pallas as pl
from jax.experimental.pallas import tpu as pltpu


def _round_up(x, m):
    return ((x + m - 1) // m) * m


def _weighted_sse_kernel(w_ref, x_ref, y_ref, o_ref):
    """Per-block, per-lane weighted partial sums.

    w_ref: (1, C) f32, weights tiled over lanes, 1/B already folded in.
    x_ref, y_ref: (block_rows, C) tiles (any float dtype; upcast here).
    o_ref: (1, 1, C) f32 lane-dense partial-sum output for this block.
    """
    x = x_ref[...].astype(jnp.float32)
    y = y_ref[...].astype(jnp.float32)
    d = x - y
    # Reduce over the (sublane) row axis first, then apply weights once per
    # lane instead of once per element.
    row_sum = jnp.sum(d * d, axis=0, keepdims=True)          # (1, C)
    o_ref[...] = (w_ref[...] * row_sum).reshape(1, 1, -1)     # (1, 1, C)


def multi_mse_loss(inp, tgt, weights):
    """Pallas implementation of MultiMSELoss.forward.

    Args:
      inp:     (B, T) predictions (f32 or bf16 etc.).
      tgt:     (B, T) targets.
      weights: (T,)   normalized task weights (sum to 1).
    Returns:
      scalar float32 loss = weights @ mean((inp - tgt)**2, axis=0).
    """
    B, T = inp.shape
    assert tgt.shape == (B, T)
    assert weights.shape == (T,)

    # Fold the 1/B batch-mean into the weights (applied once per lane).
    w32 = weights.astype(jnp.float32) / jnp.float32(B)

    if T <= 128:
        # Lane-dense path for small task counts: pad T to the next power of
        # two (always divides 128) and flatten; every 128-lane row then has an
        # identical task pattern, so one tiled (1, 128) weight row suffices.
        T_pad = 1 << max(0, (T - 1).bit_length())
        C = 128
        if T_pad != T:
            pad_t = T_pad - T
            inp_p = jnp.pad(inp, ((0, 0), (0, pad_t)))
            tgt_p = jnp.pad(tgt, ((0, 0), (0, pad_t)))
            w_pad = jnp.pad(w32, (0, pad_t))
        else:
            inp_p, tgt_p, w_pad = inp, tgt, w32
        w_row = jnp.tile(w_pad, C // T_pad)                   # (128,)
        R = pl.cdiv(B * T_pad, C)
    else:
        # Large-T path: tasks already fill the lane axis; pad T to a multiple
        # of 128 and tile directly over the batch axis.
        T_pad = _round_up(T, 128)
        C = T_pad
        pad_t = T_pad - T
        if pad_t:
            inp_p = jnp.pad(inp, ((0, 0), (0, pad_t)))
            tgt_p = jnp.pad(tgt, ((0, 0), (0, pad_t)))
            w_row = jnp.pad(w32, (0, pad_t))
        else:
            inp_p, tgt_p, w_row = inp, tgt, w32
        R = B

    x_flat = inp_p.reshape(-1)
    y_flat = tgt_p.reshape(-1)

    # Largest row-block that keeps the double-buffered pipeline comfortably
    # inside scoped VMEM on every generation (v5e 16 MiB / v6e 32 MiB /
    # v7x 32 MiB): ~<=2 MiB of input tiles in flight (2 inputs x 2 buffers).
    in_itemsize = jnp.dtype(inp.dtype).itemsize + jnp.dtype(tgt.dtype).itemsize
    bytes_per_row = C * in_itemsize
    max_rows = max(8, ((1 << 20) // bytes_per_row) // 8 * 8)
    block_rows = max(8, min(max_rows, 1024, _round_up(R, 8)))
    num_blocks = pl.cdiv(R, block_rows)
    R_pad = num_blocks * block_rows

    # Zero-pad so every block is full: padded elements have diff == 0 (and
    # padded task lanes have zero weight), so they contribute nothing.
    n_valid = x_flat.shape[0]
    n_total = R_pad * C
    if n_total != n_valid:
        x_flat = jnp.pad(x_flat, (0, n_total - n_valid))
        y_flat = jnp.pad(y_flat, (0, n_total - n_valid))
    x2d = x_flat.reshape(R_pad, C)
    y2d = y_flat.reshape(R_pad, C)
    w2d = w_row.reshape(1, C)

    n_elems = B * T
    cost = pl.CostEstimate(
        flops=3 * n_elems,
        transcendentals=0,
        bytes_accessed=n_elems * in_itemsize + 4 * C + 4 * num_blocks * C,
    )

    partials = pl.pallas_call(
        _weighted_sse_kernel,
        out_shape=jax.ShapeDtypeStruct((num_blocks, 1, C), jnp.float32),
        grid=(num_blocks,),
        in_specs=[
            pl.BlockSpec((1, C), lambda i: (0, 0)),            # weights (resident)
            pl.BlockSpec((block_rows, C), lambda i: (i, 0)),   # input tiles
            pl.BlockSpec((block_rows, C), lambda i: (i, 0)),   # target tiles
        ],
        out_specs=pl.BlockSpec((1, 1, C), lambda i: (i, 0, 0)),
        compiler_params=pltpu.CompilerParams(
            dimension_semantics=("parallel",)),
        cost_estimate=cost,
    )(w2d, x2d, y2d)

    # Tiny final reduction over per-block, per-lane partial sums.
    return jnp.sum(partials)


def make_weights(n_tasks, weights=None):
    """Deterministic parameter init mirroring MultiMSELoss.__init__."""
    if weights is None:
        w = jnp.ones((n_tasks,), dtype=jnp.float32) / n_tasks
    else:
        w = jnp.asarray(weights, dtype=jnp.float32)
        if w.shape[0] != n_tasks:
            raise ValueError("Non-matching weights and n_tasks.")
        w = w / jnp.sum(w)
    return w


def _ref_loss(inp, tgt, w):
    d = inp.astype(jnp.float32) - tgt.astype(jnp.float32)
    return jnp.dot(w, jnp.mean(jnp.square(d), axis=0))


if __name__ == "__main__":
    key = jax.random.PRNGKey(0)
    k1, k2, k3, k4 = jax.random.split(key, 4)

    # 1) Small case matching typical module usage (batch=8, n_tasks=4, f32).
    B, T = 8, 4
    inp = jax.random.normal(k1, (B, T), dtype=jnp.float32)
    tgt = jax.random.normal(k2, (B, T), dtype=jnp.float32)
    w = make_weights(T)  # default: uniform, non-trainable
    loss = jax.block_until_ready(multi_mse_loss(inp, tgt, w))
    assert jnp.allclose(loss, _ref_loss(inp, tgt, w), rtol=1e-6, atol=1e-6), loss

    # 2) Larger case: non-power-of-two n_tasks, custom weights, multi-block grid.
    B2, T2 = 20000, 6
    inp2 = jax.random.normal(k3, (B2, T2), dtype=jnp.float32)
    tgt2 = jax.random.normal(k4, (B2, T2), dtype=jnp.float32)
    w2 = make_weights(T2, weights=[1.0, 2.0, 3.0, 4.0, 5.0, 6.0])
    loss2 = jax.block_until_ready(multi_mse_loss(inp2, tgt2, w2))
    assert jnp.allclose(loss2, _ref_loss(inp2, tgt2, w2), rtol=1e-4, atol=1e-4), loss2

    # 3) bf16 inputs: cast happens inside the kernel (halves HBM traffic).
    inp3 = inp2.astype(jnp.bfloat16)
    tgt3 = tgt2.astype(jnp.bfloat16)
    loss3 = jax.block_until_ready(multi_mse_loss(inp3, tgt3, w2))
    assert jnp.allclose(loss3, _ref_loss(inp3, tgt3, w2), rtol=1e-3, atol=1e-3), loss3

    print("KERNEL_OK")
</pallas_src>

<mosaic_0001>
module attributes {stable_mosaic.version = 11 : i64} {
  func.func @_weighted_sse_kernel(%arg0: i32, %arg1: memref<1x128xf32, #tpu.memory_space<vmem>>, %arg2: memref<8x128xf32, #tpu.memory_space<vmem>>, %arg3: memref<8x128xf32, #tpu.memory_space<vmem>>, %arg4: memref<1x1x128xf32, #tpu.memory_space<vmem>>) attributes {dimension_semantics = [#tpu.dimension_semantics<parallel>], iteration_bounds = array<i64: 1>, scalar_prefetch = 0 : i64, scratch_operands = 0 : i64, tpu.core_type = #tpu.core_type<tc>, window_params = [{pipeline_mode = #tpu.pipeline_mode<synchronous>, transform_indices = @transform_0, window_bounds = array<i64: 1, 128>}, {transform_indices = @transform_1, window_bounds = array<i64: 8, 128>}, {transform_indices = @transform_2, window_bounds = array<i64: 8, 128>}, {transform_indices = @transform_3, window_bounds = array<i64: 1, 1, 128>}]} {
    %c0 = arith.constant 0 : index
    %c0_0 = arith.constant 0 : index
    %0 = vector.load %arg2[%c0, %c0_0] : memref<8x128xf32, #tpu.memory_space<vmem>>, vector<8x128xf32>
    %c0_1 = arith.constant 0 : index
    %c0_2 = arith.constant 0 : index
    %1 = vector.load %arg3[%c0_1, %c0_2] : memref<8x128xf32, #tpu.memory_space<vmem>>, vector<8x128xf32>
    %2 = arith.subf %0, %1 : vector<8x128xf32>
    %3 = arith.mulf %2, %2 : vector<8x128xf32>
    %cst = arith.constant dense<0.000000e+00> : vector<128xf32>
    %4 = vector.multi_reduction <add>, %3, %cst [0] : vector<8x128xf32> to vector<128xf32>
    %5 = vector.shape_cast %4 : vector<128xf32> to vector<1x128xf32>
    %c0_3 = arith.constant 0 : index
    %c0_4 = arith.constant 0 : index
    %6 = vector.load %arg1[%c0_3, %c0_4] : memref<1x128xf32, #tpu.memory_space<vmem>>, vector<1x128xf32>
    %7 = arith.mulf %6, %5 : vector<1x128xf32>
    %8 = vector.shape_cast %7 : vector<1x128xf32> to vector<1x1x128xf32>
    %c0_5 = arith.constant 0 : index
    %c0_6 = arith.constant 0 : index
    %c0_7 = arith.constant 0 : index
    %9 = vector.load %arg4[%c0_5, %c0_6, %c0_7] : memref<1x1x128xf32, #tpu.memory_space<vmem>>, vector<1x1x128xf32>
    tpu.vector_store %arg4[%c0_5, %c0_6, %c0_7], %8 {strides = array<i32>} : memref<1x1x128xf32, #tpu.memory_space<vmem>>, vector<1x1x128xf32>,
    return
  }
  func.func @transform_0(%arg0: i32) -> (i32, i32) {
    %c0_i32 = arith.constant 0 : i32
    %c0_i32_0 = arith.constant 0 : i32
    %c0_i32_1 = arith.constant 0 : i32
    return %c0_i32, %c0_i32_0 : i32, i32
  }
  func.func @transform_1(%arg0: i32) -> (i32, i32) {
    %c0_i32 = arith.constant 0 : i32
    %c0_i32_0 = arith.constant 0 : i32
    return %arg0, %c0_i32 : i32, i32
  }
  func.func @transform_2(%arg0: i32) -> (i32, i32) {
    %c0_i32 = arith.constant 0 : i32
    %c0_i32_0 = arith.constant 0 : i32
    return %arg0, %c0_i32 : i32, i32
  }
  func.func @transform_3(%arg0: i32) -> (i32, i32, i32) {
    %c0_i32 = arith.constant 0 : i32
    %c0_i32_0 = arith.constant 0 : i32
    %c0_i32_1 = arith.constant 0 : i32
    return %arg0, %c0_i32, %c0_i32_0 : i32, i32, i32
  }
}

</mosaic_0001>

<llo_original>
// kernel: tpu_custom_call.1
$region0: #{tpu_custom_call.1}
  #allocation0 [shape = 'u32[]', space=smem, size = 0x4, offset = 0x4, fixed_abs, tag = 'smem constant byte address 0x4 - core index']
  #allocation1 [shape = 'u32[144,128]{1,0:T(1,128)}', space=vmem, size = 0x12000, scoped, tag = 'internal scratch']
  %s0 = inlined_call_operand.hbm [shape: f32[1,128], index: 0, kind: input, shape index: {}]
  %s1 = inlined_call_operand.hbm [shape: f32[8,128], index: 1, kind: input, shape index: {}]
  %s2 = inlined_call_operand.hbm [shape: f32[8,128], index: 2, kind: input, shape index: {}]
  %s3 = inlined_call_operand.hbm [shape: f32[1,1,128], index: 3, kind: output, shape index: {}]
  %s4 = sld [smem:[#allocation0]]
  $region34: #{tpu_custom_call.1} parent=0
    _
  %s6 = ssub.s32 1, %s4
  %s7 = scalar_select 0, %s6, %s4
  $region1: #{tpu_custom_call.1} parent=0
    #allocation2 [shape = 'u8[512]{0}', space=vmem, size = 0x400, scoped, tag = 'input window, operand 0, single buffered']
    #allocation3 [shape = 's32[1]{0}', space=sflag, size = 0x4, scoped, tag = 'scoped memory for tpu_custom_call.1']
    #allocation4 [shape = 's32[1]{0}', space=sflag, size = 0x4, scoped, tag = 'scoped memory for tpu_custom_call.1']
    #allocation5 [shape = 'u8[4096]{0}', space=vmem, size = 0x1000, scoped, tag = 'input window, operand 1, single buffered']
    #allocation6 [shape = 's32[1]{0}', space=sflag, size = 0x4, scoped, tag = 'scoped memory for tpu_custom_call.1']
    #allocation7 [shape = 'u8[4096]{0}', space=vmem, size = 0x1000, scoped, tag = 'input window, operand 2, single buffered']
    #allocation8 [shape = 'u8[512]{0}', space=vmem, size = 0x400, scoped, tag = 'output window, operand 0, single buffered']
    %8 = vsyncpa [#allocation3], 0
    %9 = vsyncpa [#allocation6], 0
    %10 = vsyncpa [#allocation4], 0
    // Predicated region
    $region2: #{tpu_custom_call.1} parent=1 // pred_check
      _
    $region3: #{tpu_custom_call.1} parent=1 // pred_check_branch
      %12 = sbr.rel (0) target = $region5
    $region4: #{tpu_custom_call.1} parent=1 // pred_region
      %s14 = ssub.s32 16, 16
      %15 = vsyncadd [#allocation3], %s14
      %s17 = sshll.u32 [#allocation2], 4
      %s18 = int_to_ptr.vmem [resolvable:$true] %s17
      %20 = dma.hbm_to_vmem [thread:$0]  %s0, 16, %s18, [#allocation3]
    $region5: #{tpu_custom_call.1} parent=1 // pred_fallthru
      _
    // Predicated region
    $region6: #{tpu_custom_call.1} parent=1 // pred_check
      _
    $region7: #{tpu_custom_call.1} parent=1 // pred_check_branch
      %22 = sbr.rel (0) target = $region9
    $region8: #{tpu_custom_call.1} parent=1 // pred_region
      %s24 = ssub.s32 128, 128
      %25 = vsyncadd [#allocation6], %s24
      %s27 = sshll.u32 [#allocation5], 4
      %s28 = int_to_ptr.vmem [resolvable:$true] %s27
      %30 = dma.hbm_to_vmem [thread:$0]  %s1, 128, %s28, [#allocation6]
    $region9: #{tpu_custom_call.1} parent=1 // pred_fallthru
      _
    // Predicated region
    $region10: #{tpu_custom_call.1} parent=1 // pred_check
      _
    $region11: #{tpu_custom_call.1} parent=1 // pred_check_branch
      %32 = sbr.rel (0) target = $region13
    $region12: #{tpu_custom_call.1} parent=1 // pred_region
      %s34 = ssub.s32 128, 128
      %35 = vsyncadd [#allocation6], %s34
      %s37 = sshll.u32 [#allocation7], 4
      %s38 = int_to_ptr.vmem [resolvable:$true] %s37
      %40 = dma.hbm_to_vmem [thread:$0]  %s2, 128, %s38, [#allocation6]
    $region13: #{tpu_custom_call.1} parent=1 // pred_fallthru
      _
    // Predicated region
    $region14: #{tpu_custom_call.1} parent=1 // pred_check
      _
    $region15: #{tpu_custom_call.1} parent=1 // pred_check_branch
      %42 = sbr.rel (0) target = $region17
    $region16: #{tpu_custom_call.1} parent=1 // pred_region
      %43 = dma.done [#allocation3], 16
    $region17: #{tpu_custom_call.1} parent=1 // pred_fallthru
      _
    // Predicated region
    $region18: #{tpu_custom_call.1} parent=1 // pred_check
      _
    $region19: #{tpu_custom_call.1} parent=1 // pred_check_branch
      %45 = sbr.rel (0) target = $region21
    $region20: #{tpu_custom_call.1} parent=1 // pred_region
      %46 = dma.done [#allocation6], 128
    $region21: #{tpu_custom_call.1} parent=1 // pred_fallthru
      _
    // Predicated region
    $region22: #{tpu_custom_call.1} parent=1 // pred_check
      _
    $region23: #{tpu_custom_call.1} parent=1 // pred_check_branch
      %48 = sbr.rel (0) target = $region25
    $region24: #{tpu_custom_call.1} parent=1 // pred_region
      %49 = dma.done [#allocation6], 128
    $region25: #{tpu_custom_call.1} parent=1 // pred_fallthru
      _
    %v50 = vld [vmem:[#allocation5] sm:$0xff]
    %v51 = vld [vmem:[#allocation7] sm:$0xff]
    %v52 = vsub.f32 %v50, %v51
    %v53 = vmul.f32 %v52, %v52
    %v54 = vrot.slane %v53, 4
    %v55 = vadd.f32 %v53, %v54
    %v56 = vrot.slane %v55, 2
    %v57 = vadd.f32 %v55, %v56
    %v58 = vrot.slane %v57, 1
    %v59 = vadd.f32 %v57, %v58
    %v60 = vld [vmem:[#allocation2] sm:$0x1]
    %v61 = vmul.f32 %v60, %v59
    %62 = vst [vmem:[#allocation8] sm:$0x1] %v61
    // Predicated region
    $region26: #{tpu_custom_call.1} parent=1 // pred_check
      _
    $region27: #{tpu_custom_call.1} parent=1 // pred_check_branch
      %64 = sbr.rel (0) target = $region29
    $region28: #{tpu_custom_call.1} parent=1 // pred_region
      %s66 = ssub.s32 16, 16
      %67 = vsyncadd [#allocation4], %s66
      %s69 = sshll.u32 [#allocation8], 4
      %s70 = int_to_ptr.vmem [resolvable:$true] %s69
      %72 = dma.vmem_to_hbm [thread:$0]  %s70, 16, %s3, [#allocation4]
    $region29: #{tpu_custom_call.1} parent=1 // pred_fallthru
      _
    // Predicated region
    $region30: #{tpu_custom_call.1} parent=1 // pred_check
      _
    $region31: #{tpu_custom_call.1} parent=1 // pred_check_branch
      %74 = sbr.rel (0) target = $region33
    $region32: #{tpu_custom_call.1} parent=1 // pred_region
      %75 = dma.done [#allocation4], 16
    $region33: #{tpu_custom_call.1} parent=1 // pred_fallthru
      _
    %76 = vsyncpa [#allocation3], 1
    %77 = vsyncpa [#allocation6], 1
    %78 = vsyncpa [#allocation4], 1

</llo_original>
